<compile_context>
chip_gen: v7x
topology: tpu7x:2x2x1
jax: 0.10.0
libtpu: 0.0.40
codegen_flags: <defaults>
</compile_context>

<pallas_src>
import functools

import jax
import jax.numpy as jnp
from jax.experimental import pallas as pl
from jax.experimental.pallas import tpu as pltpu


# ---------------------------------------------------------------------------
# Pallas kernel: tiled  out = act(x @ w + b)
# ---------------------------------------------------------------------------
def _matmul_bias_act_kernel(x_ref, w_ref, b_ref, o_ref, *scratch, act):
    """One (tm, tn) output tile; grid axis 2 reduces over K tiles.

    If a VMEM scratch is supplied it is the f32 accumulator (bf16 output);
    otherwise the f32 output block itself is the accumulator (it is resident
    across the K axis because its index_map ignores k).
    """
    acc_ref = scratch[0] if scratch else o_ref
    k = pl.program_id(2)

    @pl.when(k == 0)
    def _init():
        acc_ref[...] = jnp.zeros_like(acc_ref)

    acc_ref[...] += jnp.dot(
        x_ref[...], w_ref[...], preferred_element_type=jnp.float32
    )

    @pl.when(k == pl.num_programs(2) - 1)
    def _epilogue():
        acc = acc_ref[...] + b_ref[...]
        if act == "relu":
            acc = jnp.maximum(acc, 0.0)
        elif act == "sigmoid":
            # exp + approx-reciprocal both run on the EUP slot (off the VALU);
            # the clip keeps the [0, 1] contract despite the approximation.
            acc = pl.reciprocal(1.0 + jnp.exp(-acc), approx=True)
            acc = jnp.clip(acc, 0.0, 1.0)
        o_ref[...] = acc.astype(o_ref.dtype)


def _round_up(x, m):
    return ((x + m - 1) // m) * m


def _pad2d(a, rows, cols):
    r, c = a.shape
    if (r, c) == (rows, cols):
        return a
    return jnp.pad(a, ((0, rows - r), (0, cols - c)))


def _pick_tile(total, cap):
    """Largest multiple-of-128 divisor of `total` (itself a 128-multiple) <= cap."""
    best = 128
    t = 128
    top = min(cap, total)
    while t <= top:
        if total % t == 0:
            best = t
        t += 128
    return best


def matmul_bias_act(x, w_packed, b, act="none", out_dtype=jnp.bfloat16):
    """act(x @ w + b) with a tiled, double-buffered Pallas matmul.

    x        : (M, K)   activation patches (bf16 preferred; cast if not).
    w_packed : (Kp, Np) pre-padded (128-multiples), pre-cast bf16 weight.
    b        : (N,)     f32 bias (unpadded).
    """
    M, K = x.shape
    Kp, Np = w_packed.shape
    N = b.shape[0]
    assert K <= Kp and N <= Np

    tm = min(256, _round_up(M, 16))                  # bf16 sublane packing
    Mp = _round_up(M, tm)
    # >= 2 N tiles whenever Np allows it, so both v7x TensorCores get work.
    tn = _pick_tile(Np, min(256, Np // 2) if Np >= 256 else 128)
    tk = _pick_tile(Kp, 512)

    xp = _pad2d(x, Mp, Kp).astype(jnp.bfloat16)      # no-op cast if already bf16
    bp = _pad2d(b.reshape(1, N).astype(jnp.float32), 1, Np)

    use_acc_scratch = out_dtype != jnp.float32
    kern = functools.partial(_matmul_bias_act_kernel, act=act)
    out = pl.pallas_call(
        kern,
        out_shape=jax.ShapeDtypeStruct((Mp, Np), out_dtype),
        grid=(Mp // tm, Np // tn, Kp // tk),
        in_specs=[
            pl.BlockSpec((tm, tk), lambda i, j, k: (i, k)),
            pl.BlockSpec((tk, tn), lambda i, j, k: (k, j)),
            pl.BlockSpec((1, tn), lambda i, j, k: (0, j)),
        ],
        out_specs=pl.BlockSpec((tm, tn), lambda i, j, k: (i, j)),
        scratch_shapes=(
            [pltpu.VMEM((tm, tn), jnp.float32)] if use_acc_scratch else []
        ),
        compiler_params=pltpu.CompilerParams(
            dimension_semantics=("parallel", "parallel", "arbitrary"),
            vmem_limit_bytes=32 * 1024 * 1024,
        ),
    )(xp, w_packed, bp)

    if (Mp, Np) != (M, N):
        out = out[:M, :N]
    return out


# ---------------------------------------------------------------------------
# JAX glue: NHWC patch extraction, conv and conv-transpose lowering
# ---------------------------------------------------------------------------
# TODO(synk): fold the kh*kw tap loop into the kernel's K grid axis (per-tap
# index_map / strided make_async_copy into the padded NHWC activation) so the
# im2col patches are never materialized through HBM at all.
def _im2col(x_nhwc, kh, kw, stride, pad):
    x = jnp.pad(x_nhwc, ((0, 0), (pad, pad), (pad, pad), (0, 0)))
    n, hp, wp, c = x.shape
    ho = (hp - kh) // stride + 1
    wo = (wp - kw) // stride + 1
    cols = []
    for i in range(kh):
        for j in range(kw):
            cols.append(
                x[:, i: i + stride * ho: stride, j: j + stride * wo: stride, :]
            )  # (N, Ho, Wo, C)
    patches = jnp.stack(cols, axis=3)                       # (N, Ho, Wo, kh*kw, C)
    return patches.reshape(n * ho * wo, kh * kw * c), (n, ho, wo)


def conv2d(x_nhwc, layer, kh, kw, stride, pad, act="none", out_dtype=jnp.bfloat16):
    """PyTorch-semantics Conv2d on (already-bf16) NHWC activations."""
    cout = layer["b"].shape[0]
    patches, (n, ho, wo) = _im2col(x_nhwc, kh, kw, stride, pad)
    out = matmul_bias_act(patches, layer["w"], layer["b"], act, out_dtype)
    return out.reshape(n, ho, wo, cout)


# (phase py/px, tap dy/dx) -> original 4x4 kernel index, for k=4, stride=2, pad=1
_KIDX = {(0, 0): 3, (0, 1): 1, (1, 0): 2, (1, 1): 0}


def _subpixel_weight(w):
    """(Cin, Cout, 4, 4) ConvTranspose weight -> (4*Cin, 4*Cout) matmul weight.

    Rows follow the 2x2 / stride-1 im2col K order ((dy*2+dx)*Cin + ci).
    Columns are grouped by output sub-pixel phase in (1-py, 1-px) order so the
    decoder's output interleave is a single reshape + crop (see
    conv_transpose2d_4x4s2).
    """
    cin, cout, kh, kw = w.shape
    assert kh == 4 and kw == 4
    phase_cols = []
    for qy in range(2):                  # qy = 1 - py
        for qx in range(2):              # qx = 1 - px
            py, px = 1 - qy, 1 - qx
            taps = []
            for dy in range(2):
                row = [w[:, :, _KIDX[(py, dy)], _KIDX[(px, dx)]] for dx in range(2)]
                taps.append(jnp.stack(row, axis=0))          # (2, cin, cout)
            sub = jnp.stack(taps, axis=0)                     # (dy, dx, cin, cout)
            phase_cols.append(sub.reshape(4 * cin, cout))
    return jnp.concatenate(phase_cols, axis=1)                # (4*cin, 4*cout)


def conv_transpose2d_4x4s2(x_nhwc, layer, act="none", out_dtype=jnp.bfloat16):
    """PyTorch ConvTranspose2d(k=4, stride=2, pad=1) via sub-pixel decomposition.

    The 4 output phases are one stride-1 2x2 conv sharing a single im2col and a
    single Pallas matmul (N = 4*Cout lanes).  Output pixel (2Y+py, 2X+px) comes
    from grid cell (Y+py, X+px); with the weight columns ordered (1-py, 1-px)
    the interleave out_full[2g+1-py, 2gx+1-px] = y[g, gx, phase] is a plain
    reshape and the answer is out_full[:, 1:2h+1, 1:2w+1, :].
    """
    n, h, wd, cin = x_nhwc.shape
    cout = layer["b"].shape[0]
    patches, (_, gh, gw) = _im2col(x_nhwc, 2, 2, stride=1, pad=1)   # gh=h+1, gw=w+1
    b4 = jnp.tile(layer["b"], 4)                                    # per-phase bias
    y = matmul_bias_act(patches, layer["w"], b4, act, out_dtype)
    y = y.reshape(n, gh, gw, 2, 2, cout)
    y = jnp.transpose(y, (0, 1, 3, 2, 4, 5)).reshape(n, 2 * gh, 2 * gw, cout)
    return y[:, 1:2 * h + 1, 1:2 * wd + 1, :]


# ---------------------------------------------------------------------------
# Parameters: raw PyTorch-layout init + one-time packing to matmul-ready form
# ---------------------------------------------------------------------------
def init_params(key, in_channels=3, latent_channels=4, h_dim=32):
    def conv_w(k, shape, fan_in):
        return jax.random.normal(k, shape, jnp.float32) * (1.0 / jnp.sqrt(fan_in))

    keys = jax.random.split(key, 8)
    p = {}
    # encoder (Conv2d weights: (Cout, Cin, kh, kw))
    p["e0_w"] = conv_w(keys[0], (h_dim, in_channels, 4, 4), in_channels * 16)
    p["e0_b"] = jnp.zeros((h_dim,), jnp.float32)
    p["e1_w"] = conv_w(keys[1], (h_dim * 2, h_dim, 4, 4), h_dim * 16)
    p["e1_b"] = jnp.zeros((h_dim * 2,), jnp.float32)
    p["e2_w"] = conv_w(keys[2], (h_dim * 4, h_dim * 2, 4, 4), h_dim * 2 * 16)
    p["e2_b"] = jnp.zeros((h_dim * 4,), jnp.float32)
    p["e3_w"] = conv_w(keys[3], (latent_channels * 2, h_dim * 4, 3, 3), h_dim * 4 * 9)
    p["e3_b"] = jnp.zeros((latent_channels * 2,), jnp.float32)
    # decoder (d0 is Conv2d; d1..d3 are ConvTranspose2d weights (Cin, Cout, kh, kw))
    p["d0_w"] = conv_w(keys[4], (h_dim * 4, latent_channels, 3, 3), latent_channels * 9)
    p["d0_b"] = jnp.zeros((h_dim * 4,), jnp.float32)
    p["d1_w"] = conv_w(keys[5], (h_dim * 4, h_dim * 2, 4, 4), h_dim * 4 * 16)
    p["d1_b"] = jnp.zeros((h_dim * 2,), jnp.float32)
    p["d2_w"] = conv_w(keys[6], (h_dim * 2, h_dim, 4, 4), h_dim * 2 * 16)
    p["d2_b"] = jnp.zeros((h_dim,), jnp.float32)
    p["d3_w"] = conv_w(keys[7], (h_dim, in_channels, 4, 4), h_dim * 16)
    p["d3_b"] = jnp.zeros((in_channels,), jnp.float32)
    return p


def _pack_conv(w, b):
    cout, cin, kh, kw = w.shape
    K, N = kh * kw * cin, cout
    w_mat = jnp.transpose(w, (2, 3, 1, 0)).reshape(K, N)
    w_p = _pad2d(w_mat, _round_up(K, 128), _round_up(N, 128)).astype(jnp.bfloat16)
    return {"w": w_p, "b": b.astype(jnp.float32)}


def _pack_convT(w, b):
    cin, cout = w.shape[0], w.shape[1]
    w_mat = _subpixel_weight(w)                     # (4*cin, 4*cout)
    K, N = 4 * cin, 4 * cout
    w_p = _pad2d(w_mat, _round_up(K, 128), _round_up(N, 128)).astype(jnp.bfloat16)
    return {"w": w_p, "b": b.astype(jnp.float32)}


def pack_params(rp):
    return {
        "e0": _pack_conv(rp["e0_w"], rp["e0_b"]),
        "e1": _pack_conv(rp["e1_w"], rp["e1_b"]),
        "e2": _pack_conv(rp["e2_w"], rp["e2_b"]),
        "e3": _pack_conv(rp["e3_w"], rp["e3_b"]),
        "d0": _pack_conv(rp["d0_w"], rp["d0_b"]),
        "d1": _pack_convT(rp["d1_w"], rp["d1_b"]),
        "d2": _pack_convT(rp["d2_w"], rp["d2_b"]),
        "d3": _pack_convT(rp["d3_w"], rp["d3_b"]),
    }


# ---------------------------------------------------------------------------
# VAE forward (matches the PyTorch reference module)
# ---------------------------------------------------------------------------
def vae_encode_nhwc(pp, x):
    h = conv2d(x, pp["e0"], 4, 4, 2, 1, act="relu", out_dtype=jnp.bfloat16)
    h = conv2d(h, pp["e1"], 4, 4, 2, 1, act="relu", out_dtype=jnp.bfloat16)
    h = conv2d(h, pp["e2"], 4, 4, 2, 1, act="relu", out_dtype=jnp.bfloat16)
    h = conv2d(h, pp["e3"], 3, 3, 1, 1, act="none", out_dtype=jnp.float32)
    c = h.shape[-1] // 2
    return h[..., :c], h[..., c:]          # mean, logvar (channel chunk)


def vae_decode_nhwc(pp, z_bf16):
    h = conv2d(z_bf16, pp["d0"], 3, 3, 1, 1, act="relu", out_dtype=jnp.bfloat16)
    h = conv_transpose2d_4x4s2(h, pp["d1"], act="relu", out_dtype=jnp.bfloat16)
    h = conv_transpose2d_4x4s2(h, pp["d2"], act="relu", out_dtype=jnp.bfloat16)
    h = conv_transpose2d_4x4s2(h, pp["d3"], act="sigmoid", out_dtype=jnp.float32)
    return h


# TODO(synk): at tiny shapes every layer degenerates to a ~(1,1,k) grid and the
# run is pallas_call-launch bound; e3 / d0 / reparameterize could be merged into
# one call for latency-critical small-batch inference.
def vae_forward(pp, x_nchw, eps_key):
    x = jnp.transpose(x_nchw, (0, 2, 3, 1)).astype(jnp.bfloat16)  # NCHW->NHWC + bf16, once
    mean, logvar = vae_encode_nhwc(pp, x)                         # f32
    eps = jax.random.normal(eps_key, mean.shape, jnp.float32)     # randn_like(std)
    # reparameterize: tiny element-wise op, plain jnp per perf review.
    z = mean + eps * jnp.exp(0.5 * logvar)
    recon = vae_decode_nhwc(pp, z.astype(jnp.bfloat16))
    to_nchw = lambda a: jnp.transpose(a, (0, 3, 1, 2))            # NHWC -> NCHW, once
    return to_nchw(recon), to_nchw(mean), to_nchw(logvar)


# ---------------------------------------------------------------------------
# f32 XLA references (numerics check for the bf16 Pallas path)
# ---------------------------------------------------------------------------
def _ref_conv2d_nchw(x, w, b, stride, pad):
    y = jax.lax.conv_general_dilated(
        x, w, (stride, stride), ((pad, pad), (pad, pad)),
        dimension_numbers=("NCHW", "OIHW", "NCHW"))
    return y + b.reshape(1, -1, 1, 1)


def _ref_convT_nchw(x, w, b):  # k=4, s=2, p=1; w: (Cin, Cout, 4, 4)
    wt = jnp.transpose(w[:, :, ::-1, ::-1], (1, 0, 2, 3))          # flipped, OIHW
    y = jax.lax.conv_general_dilated(
        x, wt, (1, 1), ((2, 2), (2, 2)), lhs_dilation=(2, 2),
        dimension_numbers=("NCHW", "OIHW", "NCHW"))
    return y + b.reshape(1, -1, 1, 1)


# ---------------------------------------------------------------------------
if __name__ == "__main__":
    key = jax.random.PRNGKey(0)
    k_param, k_x, k_eps, k_zt = jax.random.split(key, 4)

    in_channels, latent_channels, h_dim = 3, 4, 32   # small h_dim for the test
    batch, H, W = 2, 16, 16                          # spatial multiple of 8

    raw = init_params(k_param, in_channels, latent_channels, h_dim)
    params = pack_params(raw)                        # matmul-ready, 128-padded, bf16
    x = jax.random.normal(k_x, (batch, in_channels, H, W), jnp.float32)

    # --- layer-level numerics vs. XLA conv references (bf16 MXU tolerance) ---
    def rel_err(a, b):
        return float(jnp.max(jnp.abs(a - b)) / (jnp.max(jnp.abs(b)) + 1e-6))

    x_nhwc = jnp.transpose(x, (0, 2, 3, 1)).astype(jnp.bfloat16)
    got = conv2d(x_nhwc, params["e0"], 4, 4, 2, 1, act="relu", out_dtype=jnp.float32)
    ref = jnp.maximum(_ref_conv2d_nchw(x, raw["e0_w"], raw["e0_b"], 2, 1), 0.0)
    assert rel_err(jnp.transpose(got, (0, 3, 1, 2)), ref) < 5e-2

    zt = jax.random.normal(k_zt, (batch, h_dim * 4, 4, 4), jnp.float32)
    gotT = conv_transpose2d_4x4s2(
        jnp.transpose(zt, (0, 2, 3, 1)).astype(jnp.bfloat16), params["d1"],
        act="none", out_dtype=jnp.float32)
    refT = _ref_convT_nchw(zt, raw["d1_w"], raw["d1_b"])
    assert rel_err(jnp.transpose(gotT, (0, 3, 1, 2)), refT) < 5e-2

    # --- full forward --------------------------------------------------------
    recon, mean, logvar = jax.jit(vae_forward)(params, x, k_eps)
    jax.block_until_ready((recon, mean, logvar))

    assert recon.shape == (batch, in_channels, H, W)
    assert mean.shape == (batch, latent_channels, H // 8, W // 8)
    assert logvar.shape == (batch, latent_channels, H // 8, W // 8)
    assert bool(jnp.all(jnp.isfinite(recon)))
    assert bool(jnp.all(jnp.isfinite(mean)))
    assert bool(jnp.all(jnp.isfinite(logvar)))
    assert bool(jnp.all((recon >= 0.0) & (recon <= 1.0)))  # sigmoid output

    print("KERNEL_OK")
</pallas_src>

<mosaic_0001>
module attributes {stable_mosaic.version = 11 : i64} {
  func.func @_matmul_bias_act_kernel(%arg0: i32, %arg1: i32, %arg2: i32, %arg3: memref<128x128xbf16, #tpu.memory_space<vmem>>, %arg4: memref<128x128xbf16, #tpu.memory_space<vmem>>, %arg5: memref<1x128xf32, #tpu.memory_space<vmem>>, %arg6: memref<128x128xf32, #tpu.memory_space<vmem>>) attributes {dimension_semantics = [#tpu.dimension_semantics<parallel>, #tpu.dimension_semantics<parallel>, #tpu.dimension_semantics<arbitrary>], iteration_bounds = array<i64: 1, 1, 1>, scalar_prefetch = 0 : i64, scratch_operands = 0 : i64, tpu.core_type = #tpu.core_type<tc>, window_params = [{transform_indices = @transform_0, window_bounds = array<i64: 128, 128>}, {transform_indices = @transform_1, window_bounds = array<i64: 128, 128>}, {transform_indices = @transform_2, window_bounds = array<i64: 1, 128>}, {transform_indices = @transform_3, window_bounds = array<i64: 128, 128>}]} {
    %c0_i32 = arith.constant 0 : i32
    %0 = arith.cmpi eq, %arg2, %c0_i32 : i32
    %1 = arith.extui %0 : i1 to i32
    %c0_i32_0 = arith.constant 0 : i32
    %2 = arith.cmpi ne, %1, %c0_i32_0 : i32
    scf.if %2 {
      %cst_10 = arith.constant 0.000000e+00 : f32
      %12 = vector.broadcast %cst_10 : f32 to vector<128x128xf32>
      %c0_11 = arith.constant 0 : index
      %c0_12 = arith.constant 0 : index
      %13 = vector.load %arg6[%c0_11, %c0_12] : memref<128x128xf32, #tpu.memory_space<vmem>>, vector<128x128xf32>
      tpu.vector_store %arg6[%c0_11, %c0_12], %12 {strides = array<i32>} : memref<128x128xf32, #tpu.memory_space<vmem>>, vector<128x128xf32>,
    } else {
    }
    %c0 = arith.constant 0 : index
    %c0_1 = arith.constant 0 : index
    %3 = vector.load %arg6[%c0, %c0_1] : memref<128x128xf32, #tpu.memory_space<vmem>>, vector<128x128xf32>
    %c0_2 = arith.constant 0 : index
    %c0_3 = arith.constant 0 : index
    %4 = vector.load %arg3[%c0_2, %c0_3] : memref<128x128xbf16, #tpu.memory_space<vmem>>, vector<128x128xbf16>
    %c0_4 = arith.constant 0 : index
    %c0_5 = arith.constant 0 : index
    %5 = vector.load %arg4[%c0_4, %c0_5] : memref<128x128xbf16, #tpu.memory_space<vmem>>, vector<128x128xbf16>
    %cst = arith.constant dense<0.000000e+00> : vector<128x128xf32>
    %6 = tpu.matmul %4, %5, %cst {dimension_numbers = #tpu.dot_dimension_numbers<[1], [0], [0], [1], [0, 0, 1, 1], [], []>} : vector<128x128xbf16>, vector<128x128xbf16>, vector<128x128xf32> -> vector<128x128xf32>
    %7 = arith.addf %3, %6 : vector<128x128xf32>
    %c0_6 = arith.constant 0 : index
    %c0_7 = arith.constant 0 : index
    %8 = vector.load %arg6[%c0_6, %c0_7] : memref<128x128xf32, #tpu.memory_space<vmem>>, vector<128x128xf32>
    tpu.vector_store %arg6[%c0_6, %c0_7], %7 {strides = array<i32>} : memref<128x128xf32, #tpu.memory_space<vmem>>, vector<128x128xf32>,
    %c0_i32_8 = arith.constant 0 : i32
    %9 = arith.cmpi eq, %arg2, %c0_i32_8 : i32
    %10 = arith.extui %9 : i1 to i32
    %c0_i32_9 = arith.constant 0 : i32
    %11 = arith.cmpi ne, %10, %c0_i32_9 : i32
    scf.if %11 {
      %c0_10 = arith.constant 0 : index
      %c0_11 = arith.constant 0 : index
      %12 = vector.load %arg6[%c0_10, %c0_11] : memref<128x128xf32, #tpu.memory_space<vmem>>, vector<128x128xf32>
      %c0_12 = arith.constant 0 : index
      %c0_13 = arith.constant 0 : index
      %13 = vector.load %arg5[%c0_12, %c0_13] : memref<1x128xf32, #tpu.memory_space<vmem>>, vector<1x128xf32>
      %14 = vector.broadcast %13 : vector<1x128xf32> to vector<128x128xf32>
      %15 = arith.addf %12, %14 : vector<128x128xf32>
      %cst_14 = arith.constant 0.000000e+00 : f32
      %16 = vector.broadcast %cst_14 : f32 to vector<128x128xf32>
      %17 = arith.maximumf %15, %16 : vector<128x128xf32>
      %c0_15 = arith.constant 0 : index
      %c0_16 = arith.constant 0 : index
      %18 = vector.load %arg6[%c0_15, %c0_16] : memref<128x128xf32, #tpu.memory_space<vmem>>, vector<128x128xf32>
      tpu.vector_store %arg6[%c0_15, %c0_16], %17 {strides = array<i32>} : memref<128x128xf32, #tpu.memory_space<vmem>>, vector<128x128xf32>,
    } else {
    }
    return
  }
  func.func @transform_0(%arg0: i32, %arg1: i32, %arg2: i32) -> (i32, i32) {
    %c0_i32 = arith.constant 0 : i32
    return %arg0, %arg2 : i32, i32
  }
  func.func @transform_1(%arg0: i32, %arg1: i32, %arg2: i32) -> (i32, i32) {
    %c0_i32 = arith.constant 0 : i32
    return %arg2, %arg1 : i32, i32
  }
  func.func @transform_2(%arg0: i32, %arg1: i32, %arg2: i32) -> (i32, i32) {
    %c0_i32 = arith.constant 0 : i32
    %c0_i32_0 = arith.constant 0 : i32
    return %c0_i32, %arg1 : i32, i32
  }
  func.func @transform_3(%arg0: i32, %arg1: i32, %arg2: i32) -> (i32, i32) {
    %c0_i32 = arith.constant 0 : i32
    return %arg0, %arg1 : i32, i32
  }
}

</mosaic_0001>

<llo_original>
// kernel: tpu_custom_call.1
$region0: #{tpu_custom_call.1}
  #allocation0 [shape = 'u32[]', space=smem, size = 0x4, offset = 0x4, fixed_abs, tag = 'smem constant byte address 0x4 - core index']
  #allocation1 [shape = 'u32[144,128]{1,0:T(1,128)}', space=vmem, size = 0x12000, scoped, tag = 'internal scratch']
  %s0 = inlined_call_operand.hbm [shape: bf16[128,128], index: 0, kind: input, shape index: {}]
  %s1 = inlined_call_operand.hbm [shape: bf16[128,128], index: 1, kind: input, shape index: {}]
  %s2 = inlined_call_operand.vmem [shape: f32[1,128], index: 2, kind: input, shape index: {}]
  %s3 = inlined_call_operand.hbm [shape: f32[128,128], index: 3, kind: output, shape index: {}]
  %s4 = sld [smem:[#allocation0]]
  $region38: #{tpu_custom_call.1} parent=0
    _
  %s6 = ssub.s32 1, %s4
  %s7 = scalar_select 0, %s6, %s4
  $region1: #{tpu_custom_call.1} parent=0
    #allocation2 [shape = 'u8[32768]{0}', space=vmem, size = 0x8000, scoped, tag = 'input window, operand 0, single buffered']
    #allocation3 [shape = 's32[1]{0}', space=sflag, size = 0x4, scoped, tag = 'scoped memory for tpu_custom_call.1']
    #allocation4 [shape = 's32[1]{0}', space=sflag, size = 0x4, scoped, tag = 'scoped memory for tpu_custom_call.1']
    #allocation5 [shape = 'u8[32768]{0}', space=vmem, size = 0x8000, scoped, tag = 'input window, operand 1, single buffered']
    #allocation6 [shape = 's32[1]{0}', space=sflag, size = 0x4, scoped, tag = 'scoped memory for tpu_custom_call.1']
    #allocation7 [shape = 'u8[65536]{0}', space=vmem, size = 0x10000, scoped, tag = 'output window, operand 0, single buffered']
    %8 = vsyncpa [#allocation3], 0
    %9 = vsyncpa [#allocation6], 0
    %10 = vsyncpa [#allocation4], 0
    // Predicated region
    $region2: #{tpu_custom_call.1} parent=1 // pred_check
      _
    $region3: #{tpu_custom_call.1} parent=1 // pred_check_branch
      %12 = sbr.rel (0) target = $region5
    $region4: #{tpu_custom_call.1} parent=1 // pred_region
      %s14 = ssub.s32 1024, 1024
      %15 = vsyncadd [#allocation3], %s14
      %s16 = sshll.u32 [#allocation2], 4
      %s17 = int_to_ptr.vmem [resolvable:$true] %s16
      %22 = dma.hbm_to_vmem [thread:$0]  %s0, 1024, %s17, [#allocation3], 64, 64, 4
    $region5: #{tpu_custom_call.1} parent=1 // pred_fallthru
      _
    // Predicated region
    $region6: #{tpu_custom_call.1} parent=1 // pred_check
      _
    $region7: #{tpu_custom_call.1} parent=1 // pred_check_branch
      %24 = sbr.rel (0) target = $region9
    $region8: #{tpu_custom_call.1} parent=1 // pred_region
      %s26 = ssub.s32 1024, 1024
      %27 = vsyncadd [#allocation6], %s26
      %s28 = sshll.u32 [#allocation5], 4
      %s29 = int_to_ptr.vmem [resolvable:$true] %s28
      %34 = dma.hbm_to_vmem [thread:$0]  %s1, 1024, %s29, [#allocation6], 64, 64, 4
    $region9: #{tpu_custom_call.1} parent=1 // pred_fallthru
      _
    // Predicated region
    $region10: #{tpu_custom_call.1} parent=1 // pred_check
      _
    $region11: #{tpu_custom_call.1} parent=1 // pred_check_branch
      %36 = sbr.rel (0) target = $region13
    $region12: #{tpu_custom_call.1} parent=1 // pred_region
      _
    $region13: #{tpu_custom_call.1} parent=1 // pred_fallthru
      _
    // Predicated region
    $region14: #{tpu_custom_call.1} parent=1 // pred_check
      _
    $region15: #{tpu_custom_call.1} parent=1 // pred_check_branch
      %38 = sbr.rel (0) target = $region17
    $region16: #{tpu_custom_call.1} parent=1 // pred_region
      %39 = dma.done [#allocation3], 1024
    $region17: #{tpu_custom_call.1} parent=1 // pred_fallthru
      _
    // Predicated region
    $region18: #{tpu_custom_call.1} parent=1 // pred_check
      _
    $region19: #{tpu_custom_call.1} parent=1 // pred_check_branch
      %41 = sbr.rel (0) target = $region21
    $region20: #{tpu_custom_call.1} parent=1 // pred_region
      %42 = dma.done [#allocation6], 1024
    $region21: #{tpu_custom_call.1} parent=1 // pred_fallthru
      _
    %p44 = scmp.eq.s32.totalorder 0, 0
    // Predicated region
    $region22: #{tpu_custom_call.1} parent=1 // pred_check
      %p45 = pneg %p44
    $region23: #{tpu_custom_call.1} parent=1 // pred_check_branch
      %47 = sbr.rel (%p45) target = $region25
    $region24: #{tpu_custom_call.1} parent=1 // pred_region
      %48 = vst [vmem:[#allocation7] sm:$0xff] 0.0
      %49 = vst [vmem:[#allocation7 + $0x8] sm:$0xff] 0.0
      %50 = vst [vmem:[#allocation7 + $0x10] sm:$0xff] 0.0
      %51 = vst [vmem:[#allocation7 + $0x18] sm:$0xff] 0.0
      %52 = vst [vmem:[#allocation7 + $0x20] sm:$0xff] 0.0
      %53 = vst [vmem:[#allocation7 + $0x28] sm:$0xff] 0.0
      %54 = vst [vmem:[#allocation7 + $0x30] sm:$0xff] 0.0
      %55 = vst [vmem:[#allocation7 + $0x38] sm:$0xff] 0.0
      %56 = vst [vmem:[#allocation7 + $0x40] sm:$0xff] 0.0
      %57 = vst [vmem:[#allocation7 + $0x48] sm:$0xff] 0.0
      %58 = vst [vmem:[#allocation7 + $0x50] sm:$0xff] 0.0
      %59 = vst [vmem:[#allocation7 + $0x58] sm:$0xff] 0.0
      %60 = vst [vmem:[#allocation7 + $0x60] sm:$0xff] 0.0
      %61 = vst [vmem:[#allocation7 + $0x68] sm:$0xff] 0.0
      %62 = vst [vmem:[#allocation7 + $0x70] sm:$0xff] 0.0
      %63 = vst [vmem:[#allocation7 + $0x78] sm:$0xff] 0.0
    $region25: #{tpu_custom_call.1} parent=1 // pred_fallthru
      _
    %v64 = vld [vmem:[#allocation7] sm:$0xff]
    %v65 = vld [vmem:[#allocation7 + $0x8] sm:$0xff]
    %v66 = vld [vmem:[#allocation7 + $0x10] sm:$0xff]
    %v67 = vld [vmem:[#allocation7 + $0x18] sm:$0xff]
    %v68 = vld [vmem:[#allocation7 + $0x20] sm:$0xff]
    %v69 = vld [vmem:[#allocation7 + $0x28] sm:$0xff]
    %v70 = vld [vmem:[#allocation7 + $0x30] sm:$0xff]
    %v71 = vld [vmem:[#allocation7 + $0x38] sm:$0xff]
    %v72 = vld [vmem:[#allocation7 + $0x40] sm:$0xff]
    %v73 = vld [vmem:[#allocation7 + $0x48] sm:$0xff]
    %v74 = vld [vmem:[#allocation7 + $0x50] sm:$0xff]
    %v75 = vld [vmem:[#allocation7 + $0x58] sm:$0xff]
    %v76 = vld [vmem:[#allocation7 + $0x60] sm:$0xff]
    %v77 = vld [vmem:[#allocation7 + $0x68] sm:$0xff]
    %v78 = vld [vmem:[#allocation7 + $0x70] sm:$0xff]
    %v79 = vld [vmem:[#allocation7 + $0x78] sm:$0xff]
    %v80 = vld [vmem:[#allocation2] sm:$0xf]
    %v81 = vld [vmem:[#allocation2 + $0x4] sm:$0xf]
    %v82 = vld [vmem:[#allocation2 + $0x8] sm:$0xf]
    %v83 = vld [vmem:[#allocation2 + $0xc] sm:$0xf]
    %v84 = vld [vmem:[#allocation2 + $0x10] sm:$0xf]
    %v85 = vld [vmem:[#allocation2 + $0x14] sm:$0xf]
    %v86 = vld [vmem:[#allocation2 + $0x18] sm:$0xf]
    %v87 = vld [vmem:[#allocation2 + $0x1c] sm:$0xf]
    %v88 = vld [vmem:[#allocation2 + $0x20] sm:$0xf]
    %v89 = vld [vmem:[#allocation2 + $0x24] sm:$0xf]
    %v90 = vld [vmem:[#allocation2 + $0x28] sm:$0xf]
    %v91 = vld [vmem:[#allocation2 + $0x2c] sm:$0xf]
    %v92 = vld [vmem:[#allocation2 + $0x30] sm:$0xf]
    %v93 = vld [vmem:[#allocation2 + $0x34] sm:$0xf]
    %v94 = vld [vmem:[#allocation2 + $0x38] sm:$0xf]
    %v95 = vld [vmem:[#allocation2 + $0x3c] sm:$0xf]
    %v96 = vld [vmem:[#allocation5] sm:$0xf]
    %v97 = vld [vmem:[#allocation5 + $0x4] sm:$0xf]
    %v98 = vld [vmem:[#allocation5 + $0x8] sm:$0xf]
    %v99 = vld [vmem:[#allocation5 + $0xc] sm:$0xf]
    %v100 = vld [vmem:[#allocation5 + $0x10] sm:$0xf]
    %v101 = vld [vmem:[#allocation5 + $0x14] sm:$0xf]
    %v102 = vld [vmem:[#allocation5 + $0x18] sm:$0xf]
    %v103 = vld [vmem:[#allocation5 + $0x1c] sm:$0xf]
    %v104 = vld [vmem:[#allocation5 + $0x20] sm:$0xf]
    %v105 = vld [vmem:[#allocation5 + $0x24] sm:$0xf]
    %v106 = vld [vmem:[#allocation5 + $0x28] sm:$0xf]
    %v107 = vld [vmem:[#allocation5 + $0x2c] sm:$0xf]
    %v108 = vld [vmem:[#allocation5 + $0x30] sm:$0xf]
    %v109 = vld [vmem:[#allocation5 + $0x34] sm:$0xf]
    %v110 = vld [vmem:[#allocation5 + $0x38] sm:$0xf]
    %v111 = vld [vmem:[#allocation5 + $0x3c] sm:$0xf]
    %v128 = vunpack.c.l.b16 %v80
    %v129 = vunpack.c.l.b16 %v81
    %v130 = vunpack.c.l.b16 %v82
    %v131 = vunpack.c.l.b16 %v83
    %v132 = vunpack.c.l.b16 %v84
    %v133 = vunpack.c.l.b16 %v85
    %v134 = vunpack.c.l.b16 %v86
    %v135 = vunpack.c.l.b16 %v87
    %v136 = vunpack.c.l.b16 %v88
    %v137 = vunpack.c.l.b16 %v89
    %v138 = vunpack.c.l.b16 %v90
    %v139 = vunpack.c.l.b16 %v91
    %v140 = vunpack.c.l.b16 %v92
    %v141 = vunpack.c.l.b16 %v93
    %v142 = vunpack.c.l.b16 %v94
    %v143 = vunpack.c.l.b16 %v95
    %v144 = vpack.c.b16 %v129, %v128
    %v145 = vpack.c.b16 %v131, %v130
    %v146 = vpack.c.b16 %v133, %v132
    %v147 = vpack.c.b16 %v135, %v134
    %v148 = vpack.c.b16 %v137, %v136
    %v149 = vpack.c.b16 %v139, %v138
    %v150 = vpack.c.b16 %v141, %v140
    %v151 = vpack.c.b16 %v143, %v142
    %v176 = vunpack.c.l.b16 %v96
    %v177 = vunpack.c.l.b16 %v97
    %v178 = vunpack.c.l.b16 %v98
    %v179 = vunpack.c.l.b16 %v99
    %v180 = vunpack.c.l.b16 %v100
    %v181 = vunpack.c.l.b16 %v101
    %v182 = vunpack.c.l.b16 %v102
    %v183 = vunpack.c.l.b16 %v103
    %v184 = vunpack.c.l.b16 %v104
    %v185 = vunpack.c.l.b16 %v105
    %v186 = vunpack.c.l.b16 %v106
    %v187 = vunpack.c.l.b16 %v107
    %v188 = vunpack.c.l.b16 %v108
    %v189 = vunpack.c.l.b16 %v109
    %v190 = vunpack.c.l.b16 %v110
    %v191 = vunpack.c.l.b16 %v111
    %v192 = vpack.c.b16 %v177, %v176
    %v193 = vpack.c.b16 %v179, %v178
    %v194 = vpack.c.b16 %v181, %v180
    %v195 = vpack.c.b16 %v183, %v182
    %v196 = vpack.c.b16 %v185, %v184
    %v197 = vpack.c.b16 %v187, %v186
    %v198 = vpack.c.b16 %v189, %v188
    %v199 = vpack.c.b16 %v191, %v190
    %208 = vmatprep.subr.bf16.mxu0 0
    %209 = vmatpush1.bf16.msra.mxu0 %v192
    %210 = vmatprep.subr.bf16.mxu0 0
    %211 = vmatpush1.bf16.msra.mxu0 %v193
    %212 = vmatprep.subr.bf16.mxu0 0
    %213 = vmatpush1.bf16.msra.mxu0 %v194
    %214 = vmatprep.subr.bf16.mxu0 0
    %215 = vmatpush1.bf16.msra.mxu0 %v195
    %216 = vmatprep.subr.bf16.mxu0 0
    %217 = vmatpush1.bf16.msra.mxu0 %v196
    %218 = vmatprep.subr.bf16.mxu0 0
    %219 = vmatpush1.bf16.msra.mxu0 %v197
    %220 = vmatprep.subr.bf16.mxu0 0
    %221 = vmatpush1.bf16.msra.mxu0 %v198
    %222 = vmatprep.subr.bf16.mxu0 0
    %223 = vmatpush1.bf16.msra.mxu0 %v199
    %224 = vmatprep.subr.bf16.mxu0 0
    %225 = vmatpush1.bf16.msra.mxu0 0
    %226 = vmatprep.subr.bf16.mxu0 0
    %227 = vmatpush1.bf16.msra.mxu0 0
    %228 = vmatprep.subr.bf16.mxu0 0
    %229 = vmatpush1.bf16.msra.mxu0 0
    %230 = vmatprep.subr.bf16.mxu0 0
    %231 = vmatpush1.bf16.msra.mxu0 0
    %232 = vmatprep.subr.bf16.mxu0 0
    %233 = vmatpush1.bf16.msra.mxu0 0
    %234 = vmatprep.subr.bf16.mxu0 0
    %235 = vmatpush1.bf16.msra.mxu0 0
    %236 = vmatprep.subr.bf16.mxu0 0
    %237 = vmatpush1.bf16.msra.mxu0 0
    %238 = vmatprep.subr.bf16.mxu0 0
    %239 = vmatpush1.bf16.msra.mxu0 0
    %240 = vmatprep.mubr.bf16.mxu0 0
    %241 = vmatmul.mubr.bf16.gmra.mrb[0].mxu0 %v144
    %v242 = vpop.f32.mrb[0].mxu0
    %v243 = vadd.f32 0.0, %v242
    %v244 = vpop.f32.mrb[0].mxu0
    %v245 = vpop.f32.mrb[0].mxu0
    %v246 = vadd.f32 0.0, %v245
    %v247 = vpop.f32.mrb[0].mxu0
    %248 = vmatprep.mubr.bf16.mxu0 0
    %249 = vmatmul.mubr.bf16.gmra.mrb[0].mxu0 %v145
    %v250 = vpop.f32.mrb[0].mxu0
    %v251 = vadd.f32 0.0, %v250
    %v252 = vpop.f32.mrb[0].mxu0
    %v253 = vpop.f32.mrb[0].mxu0
    %v254 = vadd.f32 0.0, %v253
    %v255 = vpop.f32.mrb[0].mxu0
    %256 = vmatprep.mubr.bf16.mxu0 0
    %257 = vmatmul.mubr.bf16.gmra.mrb[0].mxu0 %v146
    %v258 = vpop.f32.mrb[0].mxu0
    %v259 = vadd.f32 0.0, %v258
    %v260 = vpop.f32.mrb[0].mxu0
    %v261 = vpop.f32.mrb[0].mxu0
    %v262 = vadd.f32 0.0, %v261
    %v263 = vpop.f32.mrb[0].mxu0
    %264 = vmatprep.mubr.bf16.mxu0 0
    %265 = vmatmul.mubr.bf16.gmra.mrb[0].mxu0 %v147
    %v266 = vpop.f32.mrb[0].mxu0
    %v267 = vadd.f32 0.0, %v266
    %v268 = vpop.f32.mrb[0].mxu0
    %v269 = vpop.f32.mrb[0].mxu0
    %v270 = vadd.f32 0.0, %v269
    %v271 = vpop.f32.mrb[0].mxu0
    %272 = vmatprep.mubr.bf16.mxu0 0
    %273 = vmatmul.mubr.bf16.gmra.mrb[0].mxu0 %v148
    %v274 = vpop.f32.mrb[0].mxu0
    %v275 = vadd.f32 0.0, %v274
    %v276 = vpop.f32.mrb[0].mxu0
    %v277 = vpop.f32.mrb[0].mxu0
    %v278 = vadd.f32 0.0, %v277
    %v279 = vpop.f32.mrb[0].mxu0
    %280 = vmatprep.mubr.bf16.mxu0 0
    %281 = vmatmul.mubr.bf16.gmra.mrb[0].mxu0 %v149
    %v282 = vpop.f32.mrb[0].mxu0
    %v283 = vadd.f32 0.0, %v282
    %v284 = vpop.f32.mrb[0].mxu0
    %v285 = vpop.f32.mrb[0].mxu0
    %v286 = vadd.f32 0.0, %v285
    %v287 = vpop.f32.mrb[0].mxu0
    %288 = vmatprep.mubr.bf16.mxu0 0
    %289 = vmatmul.mubr.bf16.gmra.mrb[0].mxu0 %v150
    %v290 = vpop.f32.mrb[0].mxu0
    %v291 = vadd.f32 0.0, %v290
    %v292 = vpop.f32.mrb[0].mxu0
    %v293 = vpop.f32.mrb[0].mxu0
    %v294 = vadd.f32 0.0, %v293
    %v295 = vpop.f32.mrb[0].mxu0
    %296 = vmatprep.mubr.bf16.mxu0 0
    %297 = vmatmul.mubr.bf16.gmra.mrb[0].mxu0 %v151
    %v298 = vpop.f32.mrb[0].mxu0
    %v299 = vadd.f32 0.0, %v298
    %v300 = vpop.f32.mrb[0].mxu0
    %v301 = vpop.f32.mrb[0].mxu0
    %v302 = vadd.f32 0.0, %v301
    %v303 = vpop.f32.mrb[0].mxu0
    %304 = vdwg.mxu0
    %v305 = vadd.f32 %v64, %v243
    %v306 = vadd.f32 %v65, %v246
    %v307 = vadd.f32 %v66, %v251
    %v308 = vadd.f32 %v67, %v254
    %v309 = vadd.f32 %v68, %v259
    %v310 = vadd.f32 %v69, %v262
    %v311 = vadd.f32 %v70, %v267
    %v312 = vadd.f32 %v71, %v270
    %v313 = vadd.f32 %v72, %v275
    %v314 = vadd.f32 %v73, %v278
    %v315 = vadd.f32 %v74, %v283
    %v316 = vadd.f32 %v75, %v286
    %v317 = vadd.f32 %v76, %v291
    %v318 = vadd.f32 %v77, %v294
    %v319 = vadd.f32 %v78, %v299
    %v320 = vadd.f32 %v79, %v302
    %321 = vst [vmem:[#allocation7] sm:$0xff] %v305
    %322 = vst [vmem:[#allocation7 + $0x8] sm:$0xff] %v306
    %323 = vst [vmem:[#allocation7 + $0x10] sm:$0xff] %v307
    %324 = vst [vmem:[#allocation7 + $0x18] sm:$0xff] %v308
    %325 = vst [vmem:[#allocation7 + $0x20] sm:$0xff] %v309
    %326 = vst [vmem:[#allocation7 + $0x28] sm:$0xff] %v310
    %327 = vst [vmem:[#allocation7 + $0x30] sm:$0xff] %v311
    %328 = vst [vmem:[#allocation7 + $0x38] sm:$0xff] %v312
    %329 = vst [vmem:[#allocation7 + $0x40] sm:$0xff] %v313
    %330 = vst [vmem:[#allocation7 + $0x48] sm:$0xff] %v314
    %331 = vst [vmem:[#allocation7 + $0x50] sm:$0xff] %v315
    %332 = vst [vmem:[#allocation7 + $0x58] sm:$0xff] %v316
    %333 = vst [vmem:[#allocation7 + $0x60] sm:$0xff] %v317
    %334 = vst [vmem:[#allocation7 + $0x68] sm:$0xff] %v318
    %335 = vst [vmem:[#allocation7 + $0x70] sm:$0xff] %v319
    %336 = vst [vmem:[#allocation7 + $0x78] sm:$0xff] %v320
    // Predicated region
    $region26: #{tpu_custom_call.1} parent=1 // pred_check
      %p337 = pneg %p44
    $region27: #{tpu_custom_call.1} parent=1 // pred_check_branch
      %339 = sbr.rel (%p337) target = $region29
    $region28: #{tpu_custom_call.1} parent=1 // pred_region
      %v340 = vld [vmem:[#allocation7] sm:$0xff]
      %v341 = vld [vmem:[#allocation7 + $0x8] sm:$0xff]
      %v342 = vld [vmem:[#allocation7 + $0x10] sm:$0xff]
      %v343 = vld [vmem:[#allocation7 + $0x18] sm:$0xff]
      %v344 = vld [vmem:[#allocation7 + $0x20] sm:$0xff]
      %v345 = vld [vmem:[#allocation7 + $0x28] sm:$0xff]
      %v346 = vld [vmem:[#allocation7 + $0x30] sm:$0xff]
      %v347 = vld [vmem:[#allocation7 + $0x38] sm:$0xff]
      %v348 = vld [vmem:[#allocation7 + $0x40] sm:$0xff]
      %v349 = vld [vmem:[#allocation7 + $0x48] sm:$0xff]
      %v350 = vld [vmem:[#allocation7 + $0x50] sm:$0xff]
      %v351 = vld [vmem:[#allocation7 + $0x58] sm:$0xff]
      %v352 = vld [vmem:[#allocation7 + $0x60] sm:$0xff]
      %v353 = vld [vmem:[#allocation7 + $0x68] sm:$0xff]
      %v354 = vld [vmem:[#allocation7 + $0x70] sm:$0xff]
      %v355 = vld [vmem:[#allocation7 + $0x78] sm:$0xff]
      %v356 = vld [vmem:[%s2] sm:$0x1]
      %v358 = vlaneseq
      %v359 = vshrl.u32 %v358, 7
      %v360 = vsub.s32 0, %v359
      %v361 = vrot.slane %v356, %v360
      %v363 = vadd.f32 %v340, %v361
      %v364 = vadd.f32 %v341, %v361
      %v365 = vadd.f32 %v342, %v361
      %v366 = vadd.f32 %v343, %v361
      %v367 = vadd.f32 %v344, %v361
      %v368 = vadd.f32 %v345, %v361
      %v369 = vadd.f32 %v346, %v361
      %v370 = vadd.f32 %v347, %v361
      %v371 = vadd.f32 %v348, %v361
      %v372 = vadd.f32 %v349, %v361
      %v373 = vadd.f32 %v350, %v361
      %v374 = vadd.f32 %v351, %v361
      %v375 = vadd.f32 %v352, %v361
      %v376 = vadd.f32 %v353, %v361
      %v377 = vadd.f32 %v354, %v361
      %v378 = vadd.f32 %v355, %v361
      %v379 = vmax.f32 %v363, 0.0
      %v380 = vmax.f32 %v364, 0.0
      %v381 = vmax.f32 %v365, 0.0
      %v382 = vmax.f32 %v366, 0.0
      %v383 = vmax.f32 %v367, 0.0
      %v384 = vmax.f32 %v368, 0.0
      %v385 = vmax.f32 %v369, 0.0
      %v386 = vmax.f32 %v370, 0.0
      %v387 = vmax.f32 %v371, 0.0
      %v388 = vmax.f32 %v372, 0.0
      %v389 = vmax.f32 %v373, 0.0
      %v390 = vmax.f32 %v374, 0.0
      %v391 = vmax.f32 %v375, 0.0
      %v392 = vmax.f32 %v376, 0.0
      %v393 = vmax.f32 %v377, 0.0
      %v394 = vmax.f32 %v378, 0.0
      %395 = vst [vmem:[#allocation7] sm:$0xff] %v379
      %396 = vst [vmem:[#allocation7 + $0x8] sm:$0xff] %v380
      %397 = vst [vmem:[#allocation7 + $0x10] sm:$0xff] %v381
      %398 = vst [vmem:[#allocation7 + $0x18] sm:$0xff] %v382
      %399 = vst [vmem:[#allocation7 + $0x20] sm:$0xff] %v383
      %400 = vst [vmem:[#allocation7 + $0x28] sm:$0xff] %v384
      %401 = vst [vmem:[#allocation7 + $0x30] sm:$0xff] %v385
      %402 = vst [vmem:[#allocation7 + $0x38] sm:$0xff] %v386
      %403 = vst [vmem:[#allocation7 + $0x40] sm:$0xff] %v387
      %404 = vst [vmem:[#allocation7 + $0x48] sm:$0xff] %v388
      %405 = vst [vmem:[#allocation7 + $0x50] sm:$0xff] %v389
      %406 = vst [vmem:[#allocation7 + $0x58] sm:$0xff] %v390
      %407 = vst [vmem:[#allocation7 + $0x60] sm:$0xff] %v391
      %408 = vst [vmem:[#allocation7 + $0x68] sm:$0xff] %v392
      %409 = vst [vmem:[#allocation7 + $0x70] sm:$0xff] %v393
      %410 = vst [vmem:[#allocation7 + $0x78] sm:$0xff] %v394
    $region29: #{tpu_custom_call.1} parent=1 // pred_fallthru
      _
    // Predicated region
    $region30: #{tpu_custom_call.1} parent=1 // pred_check
      _
    $region31: #{tpu_custom_call.1} parent=1 // pred_check_branch
      %412 = sbr.rel (0) target = $region33
    $region32: #{tpu_custom_call.1} parent=1 // pred_region
      %s414 = ssub.s32 2048, 2048
      %415 = vsyncadd [#allocation4], %s414
      %s416 = sshll.u32 [#allocation7], 4
      %s417 = int_to_ptr.vmem [resolvable:$true] %s416
      %422 = dma.vmem_to_hbm [thread:$0]  %s417, 2048, %s3, [#allocation4], 128, 128, 8
    $region33: #{tpu_custom_call.1} parent=1 // pred_fallthru
      _
    // Predicated region
    $region34: #{tpu_custom_call.1} parent=1 // pred_check
      _
    $region35: #{tpu_custom_call.1} parent=1 // pred_check_branch
      %424 = sbr.rel (0) target = $region37
    $region36: #{tpu_custom_call.1} parent=1 // pred_region
      %425 = dma.done [#allocation4], 2048
    $region37: #{tpu_custom_call.1} parent=1 // pred_fallthru
      _
    %426 = vsyncpa [#allocation3], 1
    %427 = vsyncpa [#allocation6], 1
    %428 = vsyncpa [#allocation4], 1

</llo_original>
